<compile_context>
chip_gen: v5e
topology: v5e:2x2
jax: 0.10.0
libtpu: 0.0.40
codegen_flags: <defaults>
</compile_context>

<pallas_src>
import jax
import jax.numpy as jnp
from jax.experimental import pallas as pl
from jax.experimental.pallas import tpu as pltpu


# --------------------------------------------------------------------------- #
# Pallas kernel: per-tile  out = (x * mask) @ W * gate_b + fused_bias_b
# --------------------------------------------------------------------------- #
def _gated_linear_kernel(x_ref, m_ref, w_ref, g_ref, fb_ref, o_ref):
    xm = x_ref[0] * m_ref[0]                                   # (TM, dim_in)
    h = jnp.dot(xm, w_ref[...], preferred_element_type=jnp.float32)  # (TM, dim_out)
    o_ref[0] = (h * g_ref[0] + fb_ref[0]).astype(o_ref.dtype)


def _round_up(a, b):
    return ((a + b - 1) // b) * b


def _gated_linear(x, mask, w_t, gate, fused_bias, *, tile_rows=512):
    """x: (B, N, dim_in), mask: (B, N, 1), w_t: (dim_in, dim_out),
    gate / fused_bias: (B, 1, dim_out)  ->  (B, N, dim_out)."""
    B, N, dim_in = x.shape
    dim_out = w_t.shape[1]

    # Tile rows: multiple of 8 (f32 sublanes), capped by tile_rows.
    tm = min(int(tile_rows), _round_up(N, 8))
    tm = _round_up(tm, 8)
    n_pad = _round_up(N, tm)
    if n_pad != N:
        pad = n_pad - N
        x = jnp.pad(x, ((0, 0), (0, pad), (0, 0)))
        mask = jnp.pad(mask, ((0, 0), (0, pad), (0, 0)))

    grid = (B, n_pad // tm)

    out = pl.pallas_call(
        _gated_linear_kernel,
        out_shape=jax.ShapeDtypeStruct((B, n_pad, dim_out), x.dtype),
        grid=grid,
        in_specs=[
            pl.BlockSpec((1, tm, dim_in), lambda b, n: (b, n, 0)),      # x tile
            pl.BlockSpec((1, tm, 1), lambda b, n: (b, n, 0)),           # mask tile
            pl.BlockSpec((dim_in, dim_out), lambda b, n: (0, 0)),       # weight (resident)
            pl.BlockSpec((1, 1, dim_out), lambda b, n: (b, 0, 0)),      # per-batch gate
            pl.BlockSpec((1, 1, dim_out), lambda b, n: (b, 0, 0)),      # per-batch fused bias
        ],
        out_specs=pl.BlockSpec((1, tm, dim_out), lambda b, n: (b, n, 0)),
        compiler_params=pltpu.CompilerParams(
            dimension_semantics=("parallel", "parallel"),
            vmem_limit_bytes=32 * 1024 * 1024,
        ),
    )(x, mask, w_t, gate, fused_bias)

    return out[:, :N, :]


# --------------------------------------------------------------------------- #
# Parameter / glue math (plain JAX, O(B) rows only)
# --------------------------------------------------------------------------- #
def _weight_norm(v, g):
    # PyTorch weight_norm(dim=0): W[o, :] = g[o] * v[o, :] / ||v[o, :]||_2 (no eps,
    # matching PyTorch exactly).
    norm = jnp.sqrt(jnp.sum(v * v, axis=1, keepdims=True))
    return (g[:, None] / norm) * v


def epic_concat_squash_linear_noact(ctx, x, mask, params, *, sum_scale=1e-4,
                                    tile_rows=512):
    """ctx: (B, 1, dim_ctx), x: (B, N, dim_in), mask: (B, N, 1)
    -> (ctx_new: (B, 1, dim_ctx), ret: (B, N, dim_out))."""
    # ---- masked pooling (O(B*N) reduce, left to XLA's fused reduce) ----
    xm_for_sum = x * mask
    x_sum = jnp.sum(xm_for_sum * mask, axis=1, keepdims=True)        # (B, 1, dim_in)
    x_mean = x_sum / jnp.sum(mask, axis=1, keepdims=True)            # (B, 1, dim_in)
    x_sum = x_sum * sum_scale

    # ---- ConcatSquashLinear_2inputs over ctx (tiny, per-batch) ----
    w_lc = _weight_norm(params["ctx_layer_v"], params["ctx_layer_g"])
    w_g1 = _weight_norm(params["ctx_gate1_v"], params["ctx_gate1_g"])
    w_b1 = _weight_norm(params["ctx_bias1_v"], params["ctx_bias1_g"])
    w_g2 = _weight_norm(params["ctx_gate2_v"], params["ctx_gate2_g"])
    w_b2 = _weight_norm(params["ctx_bias2_v"], params["ctx_bias2_g"])

    gate1 = jax.nn.sigmoid(x_sum @ w_g1.T + params["ctx_gate1_b"])
    bias1 = x_sum @ w_b1.T
    gate2 = jax.nn.sigmoid(x_mean @ w_g2.T + params["ctx_gate2_b"])
    bias2 = x_mean @ w_b2.T
    ctx_new = ((ctx @ w_lc.T + params["ctx_layer_b"]) * gate1 * gate2
               + bias1 + bias2)                                      # (B, 1, dim_ctx)

    # ---- final ConcatSquashLinear: per-batch gate / fused bias in the wrapper,
    #      heavy (B*N, dim_in) @ (dim_in, dim_out) gated matmul in Pallas ----
    w_layer = _weight_norm(params["layer_v"], params["layer_g"])     # (dim_out, dim_in)
    w_gate = _weight_norm(params["gate_v"], params["gate_g"])        # (dim_out, dim_ctx)
    w_bias = _weight_norm(params["bias_v"], params["bias_g"])        # (dim_out, dim_ctx)

    gate = jax.nn.sigmoid(ctx_new @ w_gate.T + params["gate_b"])     # (B, 1, dim_out)
    hyper_bias = ctx_new @ w_bias.T                                  # (B, 1, dim_out)
    # (x@Wl^T + b_l) * gate + hyper_bias  ==  (x@Wl^T) * gate + (b_l*gate + hyper_bias)
    fused_bias = params["layer_b"] * gate + hyper_bias               # (B, 1, dim_out)

    ret = _gated_linear(x, mask, jnp.asarray(w_layer.T), gate, fused_bias,
                        tile_rows=tile_rows)
    return ctx_new, ret


# --------------------------------------------------------------------------- #
# Pure-JAX reference (direct transcription of the PyTorch forward)
# --------------------------------------------------------------------------- #
def _reference(ctx, x, mask, params, sum_scale):
    w_lc = _weight_norm(params["ctx_layer_v"], params["ctx_layer_g"])
    w_g1 = _weight_norm(params["ctx_gate1_v"], params["ctx_gate1_g"])
    w_b1 = _weight_norm(params["ctx_bias1_v"], params["ctx_bias1_g"])
    w_g2 = _weight_norm(params["ctx_gate2_v"], params["ctx_gate2_g"])
    w_b2 = _weight_norm(params["ctx_bias2_v"], params["ctx_bias2_g"])
    w_layer = _weight_norm(params["layer_v"], params["layer_g"])
    w_gate = _weight_norm(params["gate_v"], params["gate_g"])
    w_bias = _weight_norm(params["bias_v"], params["bias_g"])

    xm = x * mask
    x_sum = jnp.sum(xm * mask, axis=1, keepdims=True)
    x_mean = x_sum / jnp.sum(mask, axis=1, keepdims=True)
    x_sum = x_sum * sum_scale

    gate1 = jax.nn.sigmoid(x_sum @ w_g1.T + params["ctx_gate1_b"])
    bias1 = x_sum @ w_b1.T
    gate2 = jax.nn.sigmoid(x_mean @ w_g2.T + params["ctx_gate2_b"])
    bias2 = x_mean @ w_b2.T
    ctx_new = ((ctx @ w_lc.T + params["ctx_layer_b"]) * gate1 * gate2
               + bias1 + bias2)

    gate = jax.nn.sigmoid(ctx_new @ w_gate.T + params["gate_b"])
    hbias = ctx_new @ w_bias.T
    ret = (xm @ w_layer.T + params["layer_b"]) * gate + hbias
    return ctx_new, ret


# --------------------------------------------------------------------------- #
if __name__ == "__main__":
    B, N = 2, 8
    dim_in, dim_out, dim_ctx = 16, 32, 8
    sum_scale = 1e-4

    keys = iter(jax.random.split(jax.random.PRNGKey(0), 32))

    def _wn_pair(out_f, in_f, scale=0.2):
        v = jax.random.normal(next(keys), (out_f, in_f), jnp.float32) * scale
        g = jax.random.uniform(next(keys), (out_f,), jnp.float32, 0.5, 1.5)
        return v, g

    def _bias(out_f):
        return jax.random.normal(next(keys), (out_f,), jnp.float32) * 0.1

    params = {}
    # _layer_ctx = ConcatSquashLinear_2inputs(dim_ctx, dim_ctx, dim_in, dim_in)
    params["ctx_layer_v"], params["ctx_layer_g"] = _wn_pair(dim_ctx, dim_ctx)
    params["ctx_layer_b"] = _bias(dim_ctx)
    params["ctx_gate1_v"], params["ctx_gate1_g"] = _wn_pair(dim_ctx, dim_in)
    params["ctx_gate1_b"] = _bias(dim_ctx)
    params["ctx_bias1_v"], params["ctx_bias1_g"] = _wn_pair(dim_ctx, dim_in)
    params["ctx_gate2_v"], params["ctx_gate2_g"] = _wn_pair(dim_ctx, dim_in)
    params["ctx_gate2_b"] = _bias(dim_ctx)
    params["ctx_bias2_v"], params["ctx_bias2_g"] = _wn_pair(dim_ctx, dim_in)
    # layer = ConcatSquashLinear(dim_in, dim_out, dim_ctx)
    params["layer_v"], params["layer_g"] = _wn_pair(dim_out, dim_in)
    params["layer_b"] = _bias(dim_out)
    params["gate_v"], params["gate_g"] = _wn_pair(dim_out, dim_ctx)
    params["gate_b"] = _bias(dim_out)
    params["bias_v"], params["bias_g"] = _wn_pair(dim_out, dim_ctx)

    ctx = jax.random.normal(next(keys), (B, 1, dim_ctx), jnp.float32)
    x = jax.random.normal(next(keys), (B, N, dim_in), jnp.float32)
    mask = (jax.random.uniform(next(keys), (B, N, 1), jnp.float32) > 0.3
            ).astype(jnp.float32)
    mask = mask.at[:, 0, :].set(1.0)   # ensure at least one active point per batch

    ctx_out, ret = epic_concat_squash_linear_noact(
        ctx, x, mask, params, sum_scale=sum_scale)
    ctx_out, ret = jax.block_until_ready((ctx_out, ret))

    ctx_ref, ret_ref = _reference(ctx, x, mask, params, sum_scale)

    assert ctx_out.shape == (B, 1, dim_ctx)
    assert ret.shape == (B, N, dim_out)
    assert jnp.allclose(ctx_out, ctx_ref, atol=1e-4, rtol=1e-4), \
        f"ctx max err {jnp.max(jnp.abs(ctx_out - ctx_ref))}"
    assert jnp.allclose(ret, ret_ref, atol=1e-4, rtol=1e-4), \
        f"ret max err {jnp.max(jnp.abs(ret - ret_ref))}"
    print("KERNEL_OK")
</pallas_src>

<mosaic_0001>
module attributes {stable_mosaic.version = 11 : i64} {
  func.func @_gated_linear_kernel(%arg0: i32, %arg1: i32, %arg2: memref<1x8x16xf32, #tpu.memory_space<vmem>>, %arg3: memref<1x8x1xf32, #tpu.memory_space<vmem>>, %arg4: memref<16x32xf32, #tpu.memory_space<vmem>>, %arg5: memref<1x1x32xf32, #tpu.memory_space<vmem>>, %arg6: memref<1x1x32xf32, #tpu.memory_space<vmem>>, %arg7: memref<1x8x32xf32, #tpu.memory_space<vmem>>) attributes {dimension_semantics = [#tpu.dimension_semantics<parallel>, #tpu.dimension_semantics<parallel>], iteration_bounds = array<i64: 2, 1>, scalar_prefetch = 0 : i64, scratch_operands = 0 : i64, tpu.core_type = #tpu.core_type<tc>, window_params = [{transform_indices = @transform_0, window_bounds = array<i64: 1, 8, 16>}, {transform_indices = @transform_1, window_bounds = array<i64: 1, 8, 1>}, {pipeline_mode = #tpu.pipeline_mode<synchronous>, transform_indices = @transform_2, window_bounds = array<i64: 16, 32>}, {transform_indices = @transform_3, window_bounds = array<i64: 1, 1, 32>}, {transform_indices = @transform_4, window_bounds = array<i64: 1, 1, 32>}, {transform_indices = @transform_5, window_bounds = array<i64: 1, 8, 32>}]} {
    %c0 = arith.constant 0 : index
    %c0_0 = arith.constant 0 : index
    %c0_1 = arith.constant 0 : index
    %0 = vector.load %arg2[%c0, %c0_0, %c0_1] : memref<1x8x16xf32, #tpu.memory_space<vmem>>, vector<1x8x16xf32>
    %1 = vector.shape_cast %0 : vector<1x8x16xf32> to vector<8x16xf32>
    %c0_2 = arith.constant 0 : index
    %c0_3 = arith.constant 0 : index
    %c0_4 = arith.constant 0 : index
    %2 = vector.load %arg3[%c0_2, %c0_3, %c0_4] : memref<1x8x1xf32, #tpu.memory_space<vmem>>, vector<1x8x1xf32>
    %3 = vector.shape_cast %2 : vector<1x8x1xf32> to vector<8x1xf32>
    %4 = vector.broadcast %3 : vector<8x1xf32> to vector<8x16xf32>
    %5 = arith.mulf %1, %4 : vector<8x16xf32>
    %c0_5 = arith.constant 0 : index
    %c0_6 = arith.constant 0 : index
    %6 = vector.load %arg4[%c0_5, %c0_6] : memref<16x32xf32, #tpu.memory_space<vmem>>, vector<16x32xf32>
    %cst = arith.constant dense<0.000000e+00> : vector<8x32xf32>
    %7 = tpu.matmul %5, %6, %cst {dimension_numbers = #tpu.dot_dimension_numbers<[1], [0], [0], [1], [0, 0, 1, 1], [], []>} : vector<8x16xf32>, vector<16x32xf32>, vector<8x32xf32> -> vector<8x32xf32>
    %c0_7 = arith.constant 0 : index
    %c0_8 = arith.constant 0 : index
    %c0_9 = arith.constant 0 : index
    %8 = vector.load %arg5[%c0_7, %c0_8, %c0_9] : memref<1x1x32xf32, #tpu.memory_space<vmem>>, vector<1x1x32xf32>
    %9 = vector.shape_cast %8 : vector<1x1x32xf32> to vector<1x32xf32>
    %10 = vector.broadcast %9 : vector<1x32xf32> to vector<8x32xf32>
    %11 = arith.mulf %7, %10 : vector<8x32xf32>
    %c0_10 = arith.constant 0 : index
    %c0_11 = arith.constant 0 : index
    %c0_12 = arith.constant 0 : index
    %12 = vector.load %arg6[%c0_10, %c0_11, %c0_12] : memref<1x1x32xf32, #tpu.memory_space<vmem>>, vector<1x1x32xf32>
    %13 = vector.shape_cast %12 : vector<1x1x32xf32> to vector<1x32xf32>
    %14 = vector.broadcast %13 : vector<1x32xf32> to vector<8x32xf32>
    %15 = arith.addf %11, %14 : vector<8x32xf32>
    %c0_13 = arith.constant 0 : index
    %c0_14 = arith.constant 0 : index
    %c0_15 = arith.constant 0 : index
    %16 = vector.load %arg7[%c0_13, %c0_14, %c0_15] : memref<1x8x32xf32, #tpu.memory_space<vmem>>, vector<1x8x32xf32>
    %17 = vector.shape_cast %16 : vector<1x8x32xf32> to vector<8x32xf32>
    %18 = vector.shape_cast %15 : vector<8x32xf32> to vector<1x8x32xf32>
    tpu.vector_store %arg7[%c0_13, %c0_14, %c0_15], %18 {strides = array<i32>} : memref<1x8x32xf32, #tpu.memory_space<vmem>>, vector<1x8x32xf32>,
    return
  }
  func.func @transform_0(%arg0: i32, %arg1: i32) -> (i32, i32, i32) {
    %c0_i32 = arith.constant 0 : i32
    %c0_i32_0 = arith.constant 0 : i32
    return %arg0, %arg1, %c0_i32 : i32, i32, i32
  }
  func.func @transform_1(%arg0: i32, %arg1: i32) -> (i32, i32, i32) {
    %c0_i32 = arith.constant 0 : i32
    %c0_i32_0 = arith.constant 0 : i32
    return %arg0, %arg1, %c0_i32 : i32, i32, i32
  }
  func.func @transform_2(%arg0: i32, %arg1: i32) -> (i32, i32) {
    %c0_i32 = arith.constant 0 : i32
    %c0_i32_0 = arith.constant 0 : i32
    %c0_i32_1 = arith.constant 0 : i32
    return %c0_i32, %c0_i32_0 : i32, i32
  }
  func.func @transform_3(%arg0: i32, %arg1: i32) -> (i32, i32, i32) {
    %c0_i32 = arith.constant 0 : i32
    %c0_i32_0 = arith.constant 0 : i32
    %c0_i32_1 = arith.constant 0 : i32
    return %arg0, %c0_i32, %c0_i32_0 : i32, i32, i32
  }
  func.func @transform_4(%arg0: i32, %arg1: i32) -> (i32, i32, i32) {
    %c0_i32 = arith.constant 0 : i32
    %c0_i32_0 = arith.constant 0 : i32
    %c0_i32_1 = arith.constant 0 : i32
    return %arg0, %c0_i32, %c0_i32_0 : i32, i32, i32
  }
  func.func @transform_5(%arg0: i32, %arg1: i32) -> (i32, i32, i32) {
    %c0_i32 = arith.constant 0 : i32
    %c0_i32_0 = arith.constant 0 : i32
    return %arg0, %arg1, %c0_i32 : i32, i32, i32
  }
}

</mosaic_0001>

<llo_original>
// kernel: tpu_custom_call.1
$region0: #{tpu_custom_call.1}
  #allocation0 [shape = 'u32[]', space=smem, size = 0x4, offset = 0x4, fixed_abs, tag = 'smem constant byte address 0x4 - core index']
  #allocation1 [shape = 'u32[72,128]{1,0:T(1,128)}', space=vmem, size = 0x9000, scoped, tag = 'internal scratch']
  %s0 = inlined_call_operand.vmem [shape: f32[2,8,16], index: 0, kind: input, shape index: {}]
  %s1 = inlined_call_operand.vmem [shape: f32[2,8,1], index: 1, kind: input, shape index: {}]
  %s2 = inlined_call_operand.hbm [shape: f32[16,32], index: 2, kind: input, shape index: {}]
  %s3 = inlined_call_operand.vmem [shape: f32[2,1,32], index: 3, kind: input, shape index: {}]
  %s4 = inlined_call_operand.vmem [shape: f32[2,1,32], index: 4, kind: input, shape index: {}]
  %s5 = inlined_call_operand.hbm [shape: f32[2,8,32], index: 5, kind: output, shape index: {}]
  %s6 = sld [smem:[#allocation0]]
  $region57: #{tpu_custom_call.1} parent=0
    _
  %s8 = ssub.s32 1, %s6
  %s9 = scalar_select 0, %s8, %s6
  $region1: #{tpu_custom_call.1} parent=0
    #allocation2 [shape = 'u8[8192]{0}', space=vmem, size = 0x2000, scoped, tag = 'input window, operand 2, single buffered']
    #allocation3 [shape = 's32[2]{0}', space=sflag, size = 0x8, scoped, tag = 'scoped memory for tpu_custom_call.1']
    #allocation4 [shape = 's32[2]{0}', space=sflag, size = 0x8, scoped, tag = 'scoped memory for tpu_custom_call.1']
    #allocation5 [shape = 'u8[8192]{0}', space=vmem, size = 0x2000, scoped, tag = 'output window, operand 0']
    %10 = vsyncpa [#allocation3], 0
    %11 = vsyncpa [#allocation4], 0
    %s12 = scalar_lea.sflag [#allocation4], 1
    %13 = vsyncpa %s12, 0
    loop: start=0, step=1, limit=4
    $region2: #{tpu_custom_call.1} parent=1 // loop_pre_header
      _
    $region3: #{tpu_custom_call.1} parent=1 // loop_header
      %s15 = sphi 0, %s19
      %p16 = scmp.ge.s32.totalorder %s15, 4
      %s22 = sphi 0, %s34
      %s23 = sphi 0, %s30
      %s24 = sphi 0, %s22
      %s25 = sphi 0, %s23
      %s26 = sphi 0, %s24
      %s27 = sphi 0, %s25
      %s39 = sphi 0, %s41
      %s42 = sphi 0, %s39
      %s43 = sphi 0, %s42
      %s59 = sphi 0, %s43
      %s67 = sphi 0, %s69
      %s70 = sphi 0, %s67
      %s71 = sphi 0, %s70
      %s87 = sphi 0, %s71
      %s91 = sphi 0, %s91
      %s93 = sphi 0, %s91
      %s94 = sphi 0, %s93
      %s108 = sphi 0, %s94
      %s114 = sphi 0, %s116
      %s117 = sphi 0, %s114
      %s118 = sphi 0, %s117
      %s134 = sphi 0, %s118
      %s140 = sphi 0, %s142
      %s143 = sphi 0, %s140
      %s144 = sphi 0, %s143
      %s160 = sphi 0, %s144
      %s168 = sphi 0, %s170
      %s171 = sphi 0, %s168
      %s172 = sphi 0, %s171
      %s188 = sphi 0, %s172
    $region4: #{tpu_custom_call.1} parent=1 // loop_header_branch
      %18 = sbr.rel (%p16) target = $region8
    $region5: #{tpu_custom_call.1} parent=1 // loop_body
      %s20 = ssub.s32 %s15, 1
      %s21 = ssub.s32 %s15, 2
      %s28 = sadd.s32 1, %s23
      %p29 = scmp.ge.s32.totalorder %s28, 1
      %s30 = scalar_select %p29, 0, %s28
      %s31 = sadd.s32 1, %s22
      %s32 = scalar_select %p29, %s31, %s22
      %p33 = scmp.ge.s32.totalorder %s32, 2
      %s34 = scalar_select %p33, 0, %s32
      %s35 = ssub.s32 %s22, %s34
      %s36 = ssub.s32 %s23, %s30
      %s37 = sor.u32 %s35, %s36
      %p38 = scmp.eq.s32.totalorder %s37, 0
      %s40 = sadd.s32 %s39, 1
      %s41 = scalar_select %p38, %s39, %s40
      %p44 = pneg %p38
      %p45 = scmp.eq.s32.totalorder %s15, 1
      %p46 = por %p44, %p45
      %p47 = scmp.ne.s32.totalorder %s39, %s42
      %p48 = scmp.eq.s32.totalorder %s15, 0
      %p49 = por %p47, %p48
      %p50 = scmp.ne.s32.totalorder %s39, %s42
      %p51 = scmp.eq.s32.totalorder %s20, 1
      %p52 = por %p50, %p51
      %p53 = scmp.ne.s32.totalorder %s42, %s43
      %p54 = scmp.eq.s32.totalorder %s20, 0
      %p55 = por %p53, %p54
      %p56 = scmp.ne.s32.totalorder %s42, %s43
      %p57 = scmp.eq.s32.totalorder %s21, 1
      %p58 = por %p56, %p57
      %p60 = scmp.ne.s32.totalorder %s43, %s59
      %p61 = scmp.eq.s32.totalorder %s21, 0
      %p62 = por %p60, %p61
      %s63 = ssub.s32 %s22, %s34
      %s64 = ssub.s32 %s23, %s30
      %s65 = sor.u32 %s63, %s64
      %p66 = scmp.eq.s32.totalorder %s65, 0
      %s68 = sadd.s32 %s67, 1
      %s69 = scalar_select %p66, %s67, %s68
      %p72 = pneg %p66
      %p73 = scmp.eq.s32.totalorder %s15, 1
      %p74 = por %p72, %p73
      %p75 = scmp.ne.s32.totalorder %s67, %s70
      %p76 = scmp.eq.s32.totalorder %s15, 0
      %p77 = por %p75, %p76
      %p78 = scmp.ne.s32.totalorder %s67, %s70
      %p79 = scmp.eq.s32.totalorder %s20, 1
      %p80 = por %p78, %p79
      %p81 = scmp.ne.s32.totalorder %s70, %s71
      %p82 = scmp.eq.s32.totalorder %s20, 0
      %p83 = por %p81, %p82
      %p84 = scmp.ne.s32.totalorder %s70, %s71
      %p85 = scmp.eq.s32.totalorder %s21, 1
      %p86 = por %p84, %p85
      %p88 = scmp.ne.s32.totalorder %s71, %s87
      %p89 = scmp.eq.s32.totalorder %s21, 0
      %p90 = por %p88, %p89
      %s92 = sadd.s32 %s91, 1
      %p95 = scmp.eq.s32.totalorder %s15, 1
      %p96 = scmp.ne.s32.totalorder %s91, %s93
      %p97 = scmp.eq.s32.totalorder %s15, 0
      %p98 = por %p96, %p97
      %p99 = scmp.ne.s32.totalorder %s91, %s93
      %p100 = scmp.eq.s32.totalorder %s20, 1
      %p101 = por %p99, %p100
      %p102 = scmp.ne.s32.totalorder %s93, %s94
      %p103 = scmp.eq.s32.totalorder %s20, 0
      %p104 = por %p102, %p103
      %p105 = scmp.ne.s32.totalorder %s93, %s94
      %p106 = scmp.eq.s32.totalorder %s21, 1
      %p107 = por %p105, %p106
      %p109 = scmp.ne.s32.totalorder %s94, %s108
      %p110 = scmp.eq.s32.totalorder %s21, 0
      %p111 = por %p109, %p110
      %s112 = ssub.s32 %s22, %s34
      %p113 = scmp.eq.s32.totalorder %s112, 0
      %s115 = sadd.s32 %s114, 1
      %s116 = scalar_select %p113, %s114, %s115
      %p119 = pneg %p113
      %p120 = scmp.eq.s32.totalorder %s15, 1
      %p121 = por %p119, %p120
      %p122 = scmp.ne.s32.totalorder %s114, %s117
      %p123 = scmp.eq.s32.totalorder %s15, 0
      %p124 = por %p122, %p123
      %p125 = scmp.ne.s32.totalorder %s114, %s117
      %p126 = scmp.eq.s32.totalorder %s20, 1
      %p127 = por %p125, %p126
      %p128 = scmp.ne.s32.totalorder %s117, %s118
      %p129 = scmp.eq.s32.totalorder %s20, 0
      %p130 = por %p128, %p129
      %p131 = scmp.ne.s32.totalorder %s117, %s118
      %p132 = scmp.eq.s32.totalorder %s21, 1
      %p133 = por %p131, %p132
      %p135 = scmp.ne.s32.totalorder %s118, %s134
      %p136 = scmp.eq.s32.totalorder %s21, 0
      %p137 = por %p135, %p136
      %s138 = ssub.s32 %s22, %s34
      %p139 = scmp.eq.s32.totalorder %s138, 0
      %s141 = sadd.s32 %s140, 1
      %s142 = scalar_select %p139, %s140, %s141
      %p145 = pneg %p139
      %p146 = scmp.eq.s32.totalorder %s15, 1
      %p147 = por %p145, %p146
      %p148 = scmp.ne.s32.totalorder %s140, %s143
      %p149 = scmp.eq.s32.totalorder %s15, 0
      %p150 = por %p148, %p149
      %p151 = scmp.ne.s32.totalorder %s140, %s143
      %p152 = scmp.eq.s32.totalorder %s20, 1
      %p153 = por %p151, %p152
      %p154 = scmp.ne.s32.totalorder %s143, %s144
      %p155 = scmp.eq.s32.totalorder %s20, 0
      %p156 = por %p154, %p155
      %p157 = scmp.ne.s32.totalorder %s143, %s144
      %p158 = scmp.eq.s32.totalorder %s21, 1
      %p159 = por %p157, %p158
      %p161 = scmp.ne.s32.totalorder %s144, %s160
      %p162 = scmp.eq.s32.totalorder %s21, 0
      %p163 = por %p161, %p162
      %s164 = ssub.s32 %s22, %s34
      %s165 = ssub.s32 %s23, %s30
      %s166 = sor.u32 %s164, %s165
      %p167 = scmp.eq.s32.totalorder %s166, 0
      %s169 = sadd.s32 %s168, 1
      %s170 = scalar_select %p167, %s168, %s169
      %p173 = pneg %p167
      %p174 = scmp.eq.s32.totalorder %s15, 1
      %p175 = por %p173, %p174
      %p176 = scmp.ne.s32.totalorder %s168, %s171
      %p177 = scmp.eq.s32.totalorder %s15, 0
      %p178 = por %p176, %p177
      %p179 = scmp.ne.s32.totalorder %s168, %s171
      %p180 = scmp.eq.s32.totalorder %s20, 1
      %p181 = por %p179, %p180
      %p182 = scmp.ne.s32.totalorder %s171, %s172
      %p183 = scmp.eq.s32.totalorder %s20, 0
      %p184 = por %p182, %p183
      %p185 = scmp.ne.s32.totalorder %s171, %s172
      %p186 = scmp.eq.s32.totalorder %s21, 1
      %p187 = por %p185, %p186
      %p189 = scmp.ne.s32.totalorder %s172, %s188
      %p190 = scmp.eq.s32.totalorder %s21, 0
      %p191 = por %p189, %p190
      %p192 = scmp.le.s32.totalorder 1, %s15
      %p193 = scmp.lt.s32.totalorder %s15, 3
      %p194 = pnand %p192, %p193
      %p195 = pneg %p194
      // Predicated region
      $region9: #{tpu_custom_call.1} parent=5 // pred_check
        _
      $region10: #{tpu_custom_call.1} parent=5 // pred_check_branch
        %197 = sbr.rel (%p194) target = $region12
      $region11: #{tpu_custom_call.1} parent=5 // pred_region
        %s198 = ssub.s32 %s15, 1
        // Predicated region
        $region13: #{tpu_custom_call.1} parent=11 // pred_check
          %p199 = pneg %p104
        $region14: #{tpu_custom_call.1} parent=11 // pred_check_branch
          %201 = sbr.rel (%p199) target = $region16
        $region15: #{tpu_custom_call.1} parent=11 // pred_region
          %203 = vsyncadd [#allocation3], 0
          %s204 = sshll.u32 %s2, 4
          %s205 = int_to_ptr.hbm [resolvable:$true] %s204
          %s206 = sshll.u32 [#allocation2], 4
          %s207 = int_to_ptr.vmem [resolvable:$true] %s206
          %212 = dma.hbm_to_vmem [thread:$0]  %s205, 256, %s207, [#allocation3], 128, 128, 8
        $region16: #{tpu_custom_call.1} parent=11 // pred_fallthru
          _
      $region12: #{tpu_custom_call.1} parent=5 // pred_fallthru
        _
      %p213 = scmp.lt.s32.totalorder %s15, 2
      // Predicated region
      $region17: #{tpu_custom_call.1} parent=5 // pred_check
        %p214 = pneg %p213
      $region18: #{tpu_custom_call.1} parent=5 // pred_check_branch
        %216 = sbr.rel (%p214) target = $region20
      $region19: #{tpu_custom_call.1} parent=5 // pred_region
        // Predicated region
        $region21: #{tpu_custom_call.1} parent=19 // pred_check
          %p217 = pneg %p49
        $region22: #{tpu_custom_call.1} parent=19 // pred_check_branch
          %219 = sbr.rel (%p217) target = $region24
        $region23: #{tpu_custom_call.1} parent=19 // pred_region
          %p220 = scmp.lt.s32.totalorder %s22, 1
          %s221 = scalar_select %p220, %s22, 1
          %p222 = scmp.lt.s32.totalorder %s23, 0
          %s223 = scalar_select %p222, %s23, 0
          %s224 = sadd.s32 %s223, %s221
          %s225 = smul.addr %s224, 8
          %s226 = scalar_lea.vmem %s0, %s225
        $region24: #{tpu_custom_call.1} parent=19 // pred_fallthru
          _
        // Predicated region
        $region25: #{tpu_custom_call.1} parent=19 // pred_check
          %p227 = pneg %p77
        $region26: #{tpu_custom_call.1} parent=19 // pred_check_branch
          %229 = sbr.rel (%p227) target = $region28
        $region27: #{tpu_custom_call.1} parent=19 // pred_region
          %p230 = scmp.lt.s32.totalorder %s22, 1
          %s231 = scalar_select %p230, %s22, 1
          %p232 = scmp.lt.s32.totalorder %s23, 0
          %s233 = scalar_select %p232, %s23, 0
          %s234 = sadd.s32 %s233, %s231
          %s235 = smul.addr %s234, 8
          %s236 = scalar_lea.vmem %s1, %s235
        $region28: #{tpu_custom_call.1} parent=19 // pred_fallthru
          _
        // Predicated region
        $region29: #{tpu_custom_call.1} parent=19 // pred_check
          %p237 = pneg %p124
        $region30: #{tpu_custom_call.1} parent=19 // pred_check_branch
          %239 = sbr.rel (%p237) target = $region32
        $region31: #{tpu_custom_call.1} parent=19 // pred_region
          %p240 = scmp.lt.s32.totalorder %s22, 1
          %s241 = scalar_select %p240, %s22, 1
          %s242 = scalar_lea.vmem %s3, %s241
        $region32: #{tpu_custom_call.1} parent=19 // pred_fallthru
          _
        // Predicated region
        $region33: #{tpu_custom_call.1} parent=19 // pred_check
          %p243 = pneg %p150
        $region34: #{tpu_custom_call.1} parent=19 // pred_check_branch
          %245 = sbr.rel (%p243) target = $region36
        $region35: #{tpu_custom_call.1} parent=19 // pred_region
          %p246 = scmp.lt.s32.totalorder %s22, 1
          %s247 = scalar_select %p246, %s22, 1
          %s248 = scalar_lea.vmem %s4, %s247
        $region36: #{tpu_custom_call.1} parent=19 // pred_fallthru
          _
      $region20: #{tpu_custom_call.1} parent=5 // pred_fallthru
        _
      %p249 = scmp.le.s32.totalorder 1, %s15
      %p250 = scmp.lt.s32.totalorder %s15, 3
      %p251 = pnand %p249, %p250
      %p252 = pneg %p251
      // Predicated region
      $region37: #{tpu_custom_call.1} parent=5 // pred_check
        _
      $region38: #{tpu_custom_call.1} parent=5 // pred_check_branch
        %254 = sbr.rel (%p251) target = $region40
      $region39: #{tpu_custom_call.1} parent=5 // pred_region
        %s255 = ssub.s32 %s15, 1
        // Predicated region
        $region41: #{tpu_custom_call.1} parent=39 // pred_check
          %p256 = pneg %p104
        $region42: #{tpu_custom_call.1} parent=39 // pred_check_branch
          %258 = sbr.rel (%p256) target = $region44
        $region43: #{tpu_custom_call.1} parent=39 // pred_region
          %260 = dma.done [#allocation3], 256
        $region44: #{tpu_custom_call.1} parent=39 // pred_fallthru
          _
        %p261 = scmp.lt.s32.totalorder %s24, 1
        %s262 = scalar_select %p261, %s24, 1
        %p263 = scmp.lt.s32.totalorder %s25, 0
        %s264 = scalar_select %p263, %s25, 0
        %s265 = sadd.s32 %s264, %s262
        %s266 = smul.addr %s265, 8
        %s267 = scalar_lea.vmem %s0, %s266
        %p268 = pneg %p55
        %p269 = pneg %p52
        %p270 = scmp.lt.s32.totalorder %s24, 1
        %s271 = scalar_select %p270, %s24, 1
        %p272 = scmp.lt.s32.totalorder %s25, 0
        %s273 = scalar_select %p272, %s25, 0
        %s274 = sadd.s32 %s273, %s271
        %s275 = smul.addr %s274, 8
        %s276 = scalar_lea.vmem %s1, %s275
        %p277 = pneg %p83
        %p278 = pneg %p80
        %p279 = pneg %p104
        %p280 = pneg %p101
        %p281 = scmp.lt.s32.totalorder %s24, 1
        %s282 = scalar_select %p281, %s24, 1
        %s283 = scalar_lea.vmem %s3, %s282
        %p284 = pneg %p130
        %p285 = pneg %p127
        %p286 = scmp.lt.s32.totalorder %s24, 1
        %s287 = scalar_select %p286, %s24, 1
        %s288 = scalar_lea.vmem %s4, %s287
        %p289 = pneg %p156
        %p290 = pneg %p153
        %p291 = pneg %p184
        %p292 = pneg %p181
        %s293 = sand.u32 %s171, 1
        %s294 = scalar_lea.sflag [#allocation4], %s293
        %s295 = sand.u32 %s171, 1
        %s296 = smul.addr %s295, 8
        %s297 = scalar_lea.vmem [#allocation5], %s296
        %p298 = scmp.lt.s32.totalorder %s24, 1
        %s299 = scalar_select %p298, %s24, 1
        %p300 = scmp.lt.s32.totalorder %s25, 0
        %s301 = scalar_select %p300, %s25, 0
        %s302 = sadd.s32 %s301, %s299
        %s303 = smul.addr %s302, 8
        %s304 = scalar_lea.vmem %s0, %s303
        %p305 = scmp.lt.s32.totalorder %s24, 1
        %s306 = scalar_select %p305, %s24, 1
        %p307 = scmp.lt.s32.totalorder %s25, 0
        %s308 = scalar_select %p307, %s25, 0
        %s309 = sadd.s32 %s308, %s306
        %s310 = smul.addr %s309, 8
        %s311 = scalar_lea.vmem %s1, %s310
        %p312 = scmp.lt.s32.totalorder %s24, 1
        %s313 = scalar_select %p312, %s24, 1
        %s314 = scalar_lea.vmem %s3, %s313
        %p315 = scmp.lt.s32.totalorder %s24, 1
        %s316 = scalar_select %p315, %s24, 1
        %s317 = scalar_lea.vmem %s4, %s316
        %v318 = vld [vmem:[%s304] sm:$0xff]
        %v319 = vld [vmem:[%s311] sm:$0xff]
        %321 = vset.pattern.permute.xlu0 0
        %322 = vperm.xlu0 %321, %v319
        %v323 = vpop.permute.xlu0 %322
        %v325 = vmul.f32 %v318, %v323
        %v326 = vld [vmem:[#allocation2] sm:$0xff]
        %v327 = vld [vmem:[#allocation2 + $0x8] sm:$0xff]
        %vm328 = vcmask 130048
        %v330 = vsel %vm328, %v325, 0
        %332 = vmatpush.msra.mxu0 0.0
        %333 = vmatpush.msra.mxu0 0.0
        %334 = vmatpush.msra.mxu0 0.0
        %335 = vmatpush.msra.mxu0 0.0
        %336 = vmatpush.msra.mxu0 0.0
        %337 = vmatpush.msra.mxu0 0.0
        %338 = vmatpush.msra.mxu0 0.0
        %339 = vmatpush.msra.mxu0 0.0
        %340 = vmatpush.msra.mxu0 0.0
        %341 = vmatpush.msra.mxu0 0.0
        %342 = vmatpush.msra.mxu0 0.0
        %343 = vmatpush.msra.mxu0 0.0
        %344 = vmatpush.msra.mxu0 0.0
        %345 = vmatpush.msra.mxu0 0.0
        %346 = vmatpush.msra.mxu0 %v327
        %347 = vmatpush.msra.mxu0 %v326
        %348 = vmatmul.f32.gmra.mxu0 %v330
        %v349 = vpop.f32.mrf.mxu0
        %v350 = vadd.f32 0.0, %v349
        %351 = vdwg.mxu0
        %v352 = vld [vmem:[%s314] sm:$0x1]
        %v354 = vperm.slane %v352, 0
        %v356 = vmul.f32 %v350, %v354
        %v357 = vld [vmem:[%s317] sm:$0x1]
        %v359 = vperm.slane %v357, 0
        %v361 = vadd.f32 %v356, %v359
        %vm362 = vcmask 261120
        %363 = vst.msk [vmem:[%s297] sm:$0xff] %vm362, %v361
        %s364 = sand.u32 %s171, 1
        %s365 = scalar_lea.sflag [#allocation4], %s364
        %s366 = sand.u32 %s171, 1
        %s367 = smul.addr %s366, 8
        %s368 = scalar_lea.vmem [#allocation5], %s367
        // Predicated region
        $region45: #{tpu_custom_call.1} parent=39 // pred_check
          %p369 = pneg %p181
        $region46: #{tpu_custom_call.1} parent=39 // pred_check_branch
          %371 = sbr.rel (%p369) target = $region48
        $region47: #{tpu_custom_call.1} parent=39 // pred_region
          %373 = vsyncadd %s365, 0
          %s374 = sadd.s32 %s25, %s24
          %s375 = smul.addr %s374, 8
          %s376 = scalar_lea.hbm %s5, %s375
          %s378 = sshll.u32 %s368, 4
          %s379 = int_to_ptr.vmem [resolvable:$true] %s378
          %s380 = sshll.u32 %s376, 4
          %s381 = int_to_ptr.hbm [resolvable:$true] %s380
          %383 = dma.vmem_to_hbm [thread:$0]  %s379, 128, %s381, %s365
        $region48: #{tpu_custom_call.1} parent=39 // pred_fallthru
          _
      $region40: #{tpu_custom_call.1} parent=5 // pred_fallthru
        _
      %p384 = scmp.le.s32.totalorder 2, %s15
      // Predicated region
      $region49: #{tpu_custom_call.1} parent=5 // pred_check
        %p385 = pneg %p384
      $region50: #{tpu_custom_call.1} parent=5 // pred_check_branch
        %387 = sbr.rel (%p385) target = $region52
      $region51: #{tpu_custom_call.1} parent=5 // pred_region
        %s388 = ssub.s32 %s15, 2
        // Predicated region
        $region53: #{tpu_custom_call.1} parent=51 // pred_check
          %p389 = pneg %p187
        $region54: #{tpu_custom_call.1} parent=51 // pred_check_branch
          %391 = sbr.rel (%p389) target = $region56
        $region55: #{tpu_custom_call.1} parent=51 // pred_region
          %s392 = sand.u32 %s172, 1
          %s393 = scalar_lea.sflag [#allocation4], %s392
          %s394 = sand.u32 %s172, 1
          %s395 = smul.addr %s394, 8
          %s396 = scalar_lea.vmem [#allocation5], %s395
          %398 = dma.done %s393, 128
        $region56: #{tpu_custom_call.1} parent=51 // pred_fallthru
          _
      $region52: #{tpu_custom_call.1} parent=5 // pred_fallthru
        _
    $region6: #{tpu_custom_call.1} parent=1 // loop_footer
      %s19 = sadd.s32 1, %s15
    $region7: #{tpu_custom_call.1} parent=1 // loop_footer_branch
      %14 = sbr.rel target = $region3
    $region8: #{tpu_custom_call.1} parent=1 // loop_exit
      _
    %399 = vsyncpa [#allocation3], 1
    %s400 = scalar_lea.sflag [#allocation3], 1
    %401 = vsyncpa %s400, 1
    %402 = vsyncpa [#allocation4], 1
    %s403 = scalar_lea.sflag [#allocation4], 1
    %404 = vsyncpa %s403, 1

</llo_original>
